<compile_context>
chip_gen: v6e
topology: v6e:2x2x1
jax: 0.10.0
libtpu: 0.0.40
codegen_flags: <defaults>
</compile_context>

<pallas_src>
import jax
import jax.numpy as jnp
from jax.experimental import pallas as pl
from jax.experimental.pallas import tpu as pltpu


def _round_up(x: int, m: int) -> int:
    return ((x + m - 1) // m) * m


def _cdiv(a: int, b: int) -> int:
    return (a + b - 1) // b


def fl_gnn_kernel(x_ref, w1_ref, b1_ref, w2_ref, b2_ref, out_ref):
    """Fused: linear -> relu -> linear -> log_softmax, transposed compact store."""
    # fc1 on the MXU: bf16 operands, f32 accumulation.
    h = jnp.dot(x_ref[...], w1_ref[...], preferred_element_type=jnp.float32)  # [tB, Hp]
    h = jnp.maximum(h + b1_ref[...], 0.0)                                      # f32 VPU
    # fc2 on the MXU in f32 (weight is resident; avoids a per-step cast).
    logits = jnp.dot(h, w2_ref[...], preferred_element_type=jnp.float32)       # [tB, Cp]
    # Class mask is baked into b2 (padded lanes hold -1e30): the plain bias add
    # also disables padded class lanes -- no iota / where needed.
    logits = logits + b2_ref[...]
    # Numerically-stable log_softmax over the class (lane) axis.
    m = jnp.max(logits, axis=-1, keepdims=True)                                # XLU
    shifted = logits - m
    lse = jnp.log(jnp.sum(jnp.exp(shifted), axis=-1, keepdims=True))           # EUP + XLU
    logp = shifted - lse                                                       # [tB, Cp] f32
    # Store transposed [C_out, tB]: lane axis = batch (dense, multiple of 128),
    # and only the (padded-to-8) real class rows are written back to HBM.
    out_ref[...] = jnp.transpose(logp)[: out_ref.shape[0], :].astype(out_ref.dtype)


def fl_gnn_forward(x, w1, b1, w2, b2, *, max_tile_rows=1024, min_parallel_batch=256):
    """Pallas wrapper.

    x:  [B, D] activations
    w1: [D, H] fc1 weight (pre-transposed), b1: [1, H]
    w2: [H, C] fc2 weight (pre-transposed), b2: [1, C]
    Returns log_softmax logits [B, C] in float32.
    """
    B, D = x.shape
    H = w1.shape[1]
    C = w2.shape[1]
    H_pad = _round_up(H, 128)      # lane-dense hidden axis
    C_pad = _round_up(C, 128)      # lane-dense class axis (in-kernel only)
    C_out = _round_up(C, 8)        # sublane-aligned compact output rows

    # Tiling: lane-dense (multiple-of-128) batch tiles.  When there is enough
    # work, force an even number of >= 2 grid steps so both TensorCores are
    # used on v7x; padded rows are zero and sliced away.
    n_steps = max(1, _cdiv(B, max_tile_rows))
    if B >= min_parallel_batch and n_steps < 2:
        n_steps = 2
    if n_steps > 1 and n_steps % 2:
        n_steps += 1
    tile_b = _round_up(_cdiv(B, n_steps), 128)
    B_pad = n_steps * tile_b

    # Parameter staging (tiny, resident in VMEM across all grid steps).
    w1p = jnp.zeros((D, H_pad), jnp.bfloat16).at[:, :H].set(w1.astype(jnp.bfloat16))
    b1p = jnp.zeros((1, H_pad), jnp.float32).at[:, :H].set(
        b1.reshape(1, H).astype(jnp.float32))
    w2p = jnp.zeros((H_pad, C_pad), jnp.float32).at[:H, :C].set(w2.astype(jnp.float32))
    # Bake the class-lane mask into the bias: padded lanes get a large finite
    # negative so exp() underflows to exactly 0 (no inf-inf NaN possible).
    b2p = jnp.full((1, C_pad), -1e30, jnp.float32).at[:, :C].set(
        b2.reshape(1, C).astype(jnp.float32))

    # Activations: cast to bf16 BEFORE zero-padding (halves the staging copy).
    xp = x.astype(jnp.bfloat16)
    if B_pad != B:
        xp = jnp.pad(xp, ((0, B_pad - B), (0, 0)))

    # Advisory cost hint for the XLA scheduler.
    cost = pl.CostEstimate(
        flops=int(2 * B_pad * (D * H_pad + H_pad * C_pad)),
        transcendentals=int(B_pad * (C_pad + 1)),       # exp per logit + log per row
        bytes_accessed=int(
            B_pad * D * 2                               # x in (bf16)
            + D * H_pad * 2 + H_pad * C_pad * 4         # resident weights
            + (H_pad + C_pad) * 4                       # biases
            + C_out * B_pad * 4),                       # compact transposed out
    )

    out_t = pl.pallas_call(
        fl_gnn_kernel,
        out_shape=jax.ShapeDtypeStruct((C_out, B_pad), jnp.float32),
        grid=(n_steps,),
        in_specs=[
            # x: one batch tile per grid step (pipelined HBM<->VMEM).
            pl.BlockSpec((tile_b, D), lambda i: (i, 0)),
            # Weights / biases: constant index_map -> resident across steps.
            pl.BlockSpec((D, H_pad), lambda i: (0, 0)),
            pl.BlockSpec((1, H_pad), lambda i: (0, 0)),
            pl.BlockSpec((H_pad, C_pad), lambda i: (0, 0)),
            pl.BlockSpec((1, C_pad), lambda i: (0, 0)),
        ],
        # Transposed compact output: [C_out, tile_b] per step, lane axis = batch.
        out_specs=pl.BlockSpec((C_out, tile_b), lambda i: (0, i)),
        compiler_params=pltpu.CompilerParams(
            dimension_semantics=("parallel",),   # shards batch tiles across TCs on v7x
        ),
        cost_estimate=cost,
    )(xp, w1p, b1p, w2p, b2p)

    # Tiny compact result: strip class / batch padding and un-transpose.
    return out_t[:C, :B].T


def init_params(key, input_size, num_classes, hidden=16):
    """PyTorch-style (uniform +-1/sqrt(fan_in)) Linear init; weights stored [in, out]."""
    k1, k2, k3, k4 = jax.random.split(key, 4)
    bound1 = 1.0 / jnp.sqrt(input_size)
    bound2 = 1.0 / jnp.sqrt(hidden)
    w1 = jax.random.uniform(k1, (input_size, hidden), jnp.float32, -bound1, bound1)
    b1 = jax.random.uniform(k2, (1, hidden), jnp.float32, -bound1, bound1)
    w2 = jax.random.uniform(k3, (hidden, num_classes), jnp.float32, -bound2, bound2)
    b2 = jax.random.uniform(k4, (1, num_classes), jnp.float32, -bound2, bound2)
    return w1, b1, w2, b2


def fl_gnn_reference(x, w1, b1, w2, b2):
    """Plain-JAX f32 reference for correctness checking."""
    h = jnp.maximum(x @ w1 + b1, 0.0)
    logits = h @ w2 + b2
    return jax.nn.log_softmax(logits, axis=1)


def _check(out, ref, batch, num_classes):
    assert out.shape == (batch, num_classes), out.shape
    assert bool(jnp.all(jnp.isfinite(out))), "non-finite values in kernel output"
    # Loose tolerance: fc1 uses bf16 operands (f32 accumulation); fc2 is f32.
    assert jnp.allclose(out, ref, atol=5e-2, rtol=5e-2), "mismatch vs JAX reference"
    # log_softmax rows must sum (in prob space) to ~1.
    assert jnp.allclose(jnp.sum(jnp.exp(out), axis=1), 1.0, atol=1e-3)


if __name__ == "__main__":
    key = jax.random.PRNGKey(0)
    input_size, num_classes = 32, 10
    kx1, kx2, kp = jax.random.split(key, 3)
    w1, b1, w2, b2 = init_params(kp, input_size, num_classes)

    # Case 1: small batch -> single grid step (tile_b = 128, padded batch rows).
    batch1 = 64
    x1 = jax.random.normal(kx1, (batch1, input_size), jnp.float32)
    out1 = jax.block_until_ready(fl_gnn_forward(x1, w1, b1, w2, b2))
    _check(out1, fl_gnn_reference(x1, w1, b1, w2, b2), batch1, num_classes)

    # Case 2: batch >= 256 -> even 2-step grid (exercises the pipelined /
    # TC-parallel path with zero padding waste).
    batch2 = 256
    x2 = jax.random.normal(kx2, (batch2, input_size), jnp.float32)
    out2 = jax.block_until_ready(fl_gnn_forward(x2, w1, b1, w2, b2))
    _check(out2, fl_gnn_reference(x2, w1, b1, w2, b2), batch2, num_classes)

    print("KERNEL_OK")
</pallas_src>

<mosaic_0001>
module attributes {stable_mosaic.version = 11 : i64} {
  func.func @fl_gnn_kernel(%arg0: i32, %arg1: memref<128x32xbf16, #tpu.memory_space<vmem>>, %arg2: memref<32x128xbf16, #tpu.memory_space<vmem>>, %arg3: memref<1x128xf32, #tpu.memory_space<vmem>>, %arg4: memref<128x128xf32, #tpu.memory_space<vmem>>, %arg5: memref<1x128xf32, #tpu.memory_space<vmem>>, %arg6: memref<16x128xf32, #tpu.memory_space<vmem>>) attributes {dimension_semantics = [#tpu.dimension_semantics<parallel>], iteration_bounds = array<i64: 1>, scalar_prefetch = 0 : i64, scratch_operands = 0 : i64, tpu.core_type = #tpu.core_type<tc>, window_params = [{transform_indices = @transform_0, window_bounds = array<i64: 128, 32>}, {pipeline_mode = #tpu.pipeline_mode<synchronous>, transform_indices = @transform_1, window_bounds = array<i64: 32, 128>}, {pipeline_mode = #tpu.pipeline_mode<synchronous>, transform_indices = @transform_2, window_bounds = array<i64: 1, 128>}, {pipeline_mode = #tpu.pipeline_mode<synchronous>, transform_indices = @transform_3, window_bounds = array<i64: 128, 128>}, {pipeline_mode = #tpu.pipeline_mode<synchronous>, transform_indices = @transform_4, window_bounds = array<i64: 1, 128>}, {transform_indices = @transform_5, window_bounds = array<i64: 16, 128>}]} {
    %c0 = arith.constant 0 : index
    %c0_0 = arith.constant 0 : index
    %0 = vector.load %arg1[%c0, %c0_0] : memref<128x32xbf16, #tpu.memory_space<vmem>>, vector<128x32xbf16>
    %c0_1 = arith.constant 0 : index
    %c0_2 = arith.constant 0 : index
    %1 = vector.load %arg2[%c0_1, %c0_2] : memref<32x128xbf16, #tpu.memory_space<vmem>>, vector<32x128xbf16>
    %cst = arith.constant dense<0.000000e+00> : vector<128x128xf32>
    %2 = tpu.matmul %0, %1, %cst {dimension_numbers = #tpu.dot_dimension_numbers<[1], [0], [0], [1], [0, 0, 1, 1], [], []>} : vector<128x32xbf16>, vector<32x128xbf16>, vector<128x128xf32> -> vector<128x128xf32>
    %c0_3 = arith.constant 0 : index
    %c0_4 = arith.constant 0 : index
    %3 = vector.load %arg3[%c0_3, %c0_4] : memref<1x128xf32, #tpu.memory_space<vmem>>, vector<1x128xf32>
    %4 = vector.broadcast %3 : vector<1x128xf32> to vector<128x128xf32>
    %5 = arith.addf %2, %4 : vector<128x128xf32>
    %cst_5 = arith.constant 0.000000e+00 : f32
    %6 = vector.broadcast %cst_5 : f32 to vector<128x128xf32>
    %7 = arith.maximumf %5, %6 : vector<128x128xf32>
    %c0_6 = arith.constant 0 : index
    %c0_7 = arith.constant 0 : index
    %8 = vector.load %arg4[%c0_6, %c0_7] : memref<128x128xf32, #tpu.memory_space<vmem>>, vector<128x128xf32>
    %cst_8 = arith.constant dense<0.000000e+00> : vector<128x128xf32>
    %9 = tpu.matmul %7, %8, %cst_8 {dimension_numbers = #tpu.dot_dimension_numbers<[1], [0], [0], [1], [0, 0, 1, 1], [], []>} : vector<128x128xf32>, vector<128x128xf32>, vector<128x128xf32> -> vector<128x128xf32>
    %c0_9 = arith.constant 0 : index
    %c0_10 = arith.constant 0 : index
    %10 = vector.load %arg5[%c0_9, %c0_10] : memref<1x128xf32, #tpu.memory_space<vmem>>, vector<1x128xf32>
    %11 = vector.broadcast %10 : vector<1x128xf32> to vector<128x128xf32>
    %12 = arith.addf %9, %11 : vector<128x128xf32>
    %cst_11 = arith.constant dense<0xFF800000> : vector<128xf32>
    %13 = vector.multi_reduction <maximumf>, %12, %cst_11 [1] : vector<128x128xf32> to vector<128xf32>
    %14 = vector.shape_cast %13 : vector<128xf32> to vector<128x1xf32>
    %15 = vector.broadcast %14 : vector<128x1xf32> to vector<128x128xf32>
    %16 = arith.subf %12, %15 : vector<128x128xf32>
    %17 = math.exp %16 : vector<128x128xf32>
    %cst_12 = arith.constant dense<0.000000e+00> : vector<128xf32>
    %18 = vector.multi_reduction <add>, %17, %cst_12 [1] : vector<128x128xf32> to vector<128xf32>
    %19 = vector.shape_cast %18 : vector<128xf32> to vector<128x1xf32>
    %20 = math.log %19 : vector<128x1xf32>
    %21 = vector.broadcast %20 : vector<128x1xf32> to vector<128x128xf32>
    %22 = arith.subf %16, %21 : vector<128x128xf32>
    %23 = tpu.transpose %22, [1, 0] : vector<128x128xf32> -> vector<128x128xf32>
    %24 = vector.extract_strided_slice %23 {offsets = [0, 0], sizes = [16, 128], strides = [1, 1]} : vector<128x128xf32> to vector<16x128xf32>
    %c0_13 = arith.constant 0 : index
    %c0_14 = arith.constant 0 : index
    %25 = vector.load %arg6[%c0_13, %c0_14] : memref<16x128xf32, #tpu.memory_space<vmem>>, vector<16x128xf32>
    tpu.vector_store %arg6[%c0_13, %c0_14], %24 {strides = array<i32>} : memref<16x128xf32, #tpu.memory_space<vmem>>, vector<16x128xf32>,
    return
  }
  func.func @transform_0(%arg0: i32) -> (i32, i32) {
    %c0_i32 = arith.constant 0 : i32
    %c0_i32_0 = arith.constant 0 : i32
    return %arg0, %c0_i32 : i32, i32
  }
  func.func @transform_1(%arg0: i32) -> (i32, i32) {
    %c0_i32 = arith.constant 0 : i32
    %c0_i32_0 = arith.constant 0 : i32
    %c0_i32_1 = arith.constant 0 : i32
    return %c0_i32, %c0_i32_0 : i32, i32
  }
  func.func @transform_2(%arg0: i32) -> (i32, i32) {
    %c0_i32 = arith.constant 0 : i32
    %c0_i32_0 = arith.constant 0 : i32
    %c0_i32_1 = arith.constant 0 : i32
    return %c0_i32, %c0_i32_0 : i32, i32
  }
  func.func @transform_3(%arg0: i32) -> (i32, i32) {
    %c0_i32 = arith.constant 0 : i32
    %c0_i32_0 = arith.constant 0 : i32
    %c0_i32_1 = arith.constant 0 : i32
    return %c0_i32, %c0_i32_0 : i32, i32
  }
  func.func @transform_4(%arg0: i32) -> (i32, i32) {
    %c0_i32 = arith.constant 0 : i32
    %c0_i32_0 = arith.constant 0 : i32
    %c0_i32_1 = arith.constant 0 : i32
    return %c0_i32, %c0_i32_0 : i32, i32
  }
  func.func @transform_5(%arg0: i32) -> (i32, i32) {
    %c0_i32 = arith.constant 0 : i32
    %c0_i32_0 = arith.constant 0 : i32
    return %c0_i32, %arg0 : i32, i32
  }
}

</mosaic_0001>

<llo_original>
// kernel: tpu_custom_call.1
$region0: #{tpu_custom_call.1}
  #allocation0 [shape = 'u32[]', space=smem, size = 0x4, offset = 0x4, fixed_abs, tag = 'smem constant byte address 0x4 - core index']
  #allocation1 [shape = 'u32[144,128]{1,0:T(1,128)}', space=vmem, size = 0x12000, scoped, tag = 'internal scratch']
  %s0 = inlined_call_operand.vmem [shape: bf16[128,32], index: 0, kind: input, shape index: {}]
  %s1 = inlined_call_operand.vmem [shape: bf16[32,128], index: 1, kind: input, shape index: {}]
  %s2 = inlined_call_operand.vmem [shape: f32[1,128], index: 2, kind: input, shape index: {}]
  %s3 = inlined_call_operand.hbm [shape: f32[128,128], index: 3, kind: input, shape index: {}]
  %s4 = inlined_call_operand.vmem [shape: f32[1,128], index: 4, kind: input, shape index: {}]
  %s5 = inlined_call_operand.hbm [shape: f32[16,128], index: 5, kind: output, shape index: {}]
  %s6 = sld [smem:[#allocation0]]
  $region34: #{tpu_custom_call.1} parent=0
    _
  %s8 = ssub.s32 1, %s6
  %s9 = scalar_select 0, %s8, %s6
  $region1: #{tpu_custom_call.1} parent=0
    #allocation2 [shape = 'u8[65536]{0}', space=vmem, size = 0x10000, scoped, tag = 'input window, operand 3, single buffered']
    #allocation3 [shape = 's32[1]{0}', space=sflag, size = 0x4, scoped, tag = 'scoped memory for tpu_custom_call.1']
    #allocation4 [shape = 's32[1]{0}', space=sflag, size = 0x4, scoped, tag = 'scoped memory for tpu_custom_call.1']
    #allocation5 [shape = 'u8[8192]{0}', space=vmem, size = 0x2000, scoped, tag = 'output window, operand 0, single buffered']
    %10 = vsyncpa [#allocation3], 0
    %11 = vsyncpa [#allocation4], 0
    // Predicated region
    $region2: #{tpu_custom_call.1} parent=1 // pred_check
      _
    $region3: #{tpu_custom_call.1} parent=1 // pred_check_branch
      %13 = sbr.rel (0) target = $region5
    $region4: #{tpu_custom_call.1} parent=1 // pred_region
      _
    $region5: #{tpu_custom_call.1} parent=1 // pred_fallthru
      _
    // Predicated region
    $region6: #{tpu_custom_call.1} parent=1 // pred_check
      _
    $region7: #{tpu_custom_call.1} parent=1 // pred_check_branch
      %15 = sbr.rel (0) target = $region9
    $region8: #{tpu_custom_call.1} parent=1 // pred_region
      _
    $region9: #{tpu_custom_call.1} parent=1 // pred_fallthru
      _
    // Predicated region
    $region10: #{tpu_custom_call.1} parent=1 // pred_check
      _
    $region11: #{tpu_custom_call.1} parent=1 // pred_check_branch
      %17 = sbr.rel (0) target = $region13
    $region12: #{tpu_custom_call.1} parent=1 // pred_region
      _
    $region13: #{tpu_custom_call.1} parent=1 // pred_fallthru
      _
    // Predicated region
    $region14: #{tpu_custom_call.1} parent=1 // pred_check
      _
    $region15: #{tpu_custom_call.1} parent=1 // pred_check_branch
      %19 = sbr.rel (0) target = $region17
    $region16: #{tpu_custom_call.1} parent=1 // pred_region
      %s21 = ssub.s32 2048, 2048
      %22 = vsyncadd [#allocation3], %s21
      %s23 = sshll.u32 [#allocation2], 4
      %s24 = int_to_ptr.vmem [resolvable:$true] %s23
      %29 = dma.hbm_to_vmem [thread:$0]  %s3, 2048, %s24, [#allocation3], 128, 128, 8
    $region17: #{tpu_custom_call.1} parent=1 // pred_fallthru
      _
    // Predicated region
    $region18: #{tpu_custom_call.1} parent=1 // pred_check
      _
    $region19: #{tpu_custom_call.1} parent=1 // pred_check_branch
      %31 = sbr.rel (0) target = $region21
    $region20: #{tpu_custom_call.1} parent=1 // pred_region
      _
    $region21: #{tpu_custom_call.1} parent=1 // pred_fallthru
      _
    // Predicated region
    $region22: #{tpu_custom_call.1} parent=1 // pred_check
      _
    $region23: #{tpu_custom_call.1} parent=1 // pred_check_branch
      %33 = sbr.rel (0) target = $region25
    $region24: #{tpu_custom_call.1} parent=1 // pred_region
      %34 = dma.done [#allocation3], 2048
    $region25: #{tpu_custom_call.1} parent=1 // pred_fallthru
      _
    %v36 = vld [vmem:[%s0] sm:$0xf]
    %v37 = vld [vmem:[%s0 + $0x4] sm:$0xf]
    %v38 = vld [vmem:[%s0 + $0x8] sm:$0xf]
    %v39 = vld [vmem:[%s0 + $0xc] sm:$0xf]
    %v40 = vld [vmem:[%s0 + $0x10] sm:$0xf]
    %v41 = vld [vmem:[%s0 + $0x14] sm:$0xf]
    %v42 = vld [vmem:[%s0 + $0x18] sm:$0xf]
    %v43 = vld [vmem:[%s0 + $0x1c] sm:$0xf]
    %v44 = vld [vmem:[%s0 + $0x20] sm:$0xf]
    %v45 = vld [vmem:[%s0 + $0x24] sm:$0xf]
    %v46 = vld [vmem:[%s0 + $0x28] sm:$0xf]
    %v47 = vld [vmem:[%s0 + $0x2c] sm:$0xf]
    %v48 = vld [vmem:[%s0 + $0x30] sm:$0xf]
    %v49 = vld [vmem:[%s0 + $0x34] sm:$0xf]
    %v50 = vld [vmem:[%s0 + $0x38] sm:$0xf]
    %v51 = vld [vmem:[%s0 + $0x3c] sm:$0xf]
    %v52 = vld [vmem:[%s1] sm:$0xf]
    %v53 = vld [vmem:[%s1 + $0x4] sm:$0xf]
    %v54 = vld [vmem:[%s1 + $0x8] sm:$0xf]
    %v55 = vld [vmem:[%s1 + $0xc] sm:$0xf]
    %v56 = vld [vmem:[%s2] sm:$0x1]
    %v58 = vlaneseq
    %v59 = vshrl.u32 %v58, 7
    %v60 = vsub.s32 0, %v59
    %v61 = vrot.slane %v56, %v60
    %v79 = vunpack.c.l.b16 %v36
    %v80 = vunpack.c.l.b16 %v37
    %v81 = vunpack.c.l.b16 %v38
    %v82 = vunpack.c.l.b16 %v39
    %v83 = vunpack.c.l.b16 %v40
    %v84 = vunpack.c.l.b16 %v41
    %v85 = vunpack.c.l.b16 %v42
    %v86 = vunpack.c.l.b16 %v43
    %v87 = vunpack.c.l.b16 %v44
    %v88 = vunpack.c.l.b16 %v45
    %v89 = vunpack.c.l.b16 %v46
    %v90 = vunpack.c.l.b16 %v47
    %v91 = vunpack.c.l.b16 %v48
    %v92 = vunpack.c.l.b16 %v49
    %v93 = vunpack.c.l.b16 %v50
    %v94 = vunpack.c.l.b16 %v51
    %v95 = vpack.c.b16 %v80, %v79
    %v96 = vpack.c.b16 %v82, %v81
    %v97 = vpack.c.b16 %v84, %v83
    %v98 = vpack.c.b16 %v86, %v85
    %v99 = vpack.c.b16 %v88, %v87
    %v100 = vpack.c.b16 %v90, %v89
    %v101 = vpack.c.b16 %v92, %v91
    %v102 = vpack.c.b16 %v94, %v93
    %v107 = vunpack.c.l.b16 %v52
    %v108 = vunpack.c.l.b16 %v53
    %v109 = vunpack.c.l.b16 %v54
    %v110 = vunpack.c.l.b16 %v55
    %v111 = vpack.c.b16 %v108, %v107
    %v112 = vpack.c.b16 %v110, %v109
    %vm115 = vcmask 261120
    %v117 = vsel %vm115, %v95, 0
    %v120 = vsel %vm115, %v96, 0
    %v123 = vsel %vm115, %v97, 0
    %v126 = vsel %vm115, %v98, 0
    %v129 = vsel %vm115, %v99, 0
    %v132 = vsel %vm115, %v100, 0
    %v135 = vsel %vm115, %v101, 0
    %v138 = vsel %vm115, %v102, 0
    %140 = vmatprep.subr.bf16.mxu0 0
    %141 = vmatpush1.bf16.msra.mxu0 0
    %142 = vmatprep.subr.bf16.mxu0 0
    %143 = vmatpush1.bf16.msra.mxu0 0
    %144 = vmatprep.subr.bf16.mxu0 0
    %145 = vmatpush1.bf16.msra.mxu0 0
    %146 = vmatprep.subr.bf16.mxu0 0
    %147 = vmatpush1.bf16.msra.mxu0 0
    %148 = vmatprep.subr.bf16.mxu0 0
    %149 = vmatpush1.bf16.msra.mxu0 0
    %150 = vmatprep.subr.bf16.mxu0 0
    %151 = vmatpush1.bf16.msra.mxu0 0
    %152 = vmatprep.subr.bf16.mxu0 0
    %153 = vmatpush1.bf16.msra.mxu0 %v112
    %154 = vmatprep.subr.bf16.mxu0 0
    %155 = vmatpush1.bf16.msra.mxu0 %v111
    %156 = vmatprep.subr.bf16.mxu0 0
    %157 = vmatpush2.bf16.msra.mxu0 0
    %158 = vmatprep.subr.bf16.mxu0 0
    %159 = vmatpush2.bf16.msra.mxu0 0
    %160 = vmatprep.subr.bf16.mxu0 0
    %161 = vmatpush2.bf16.msra.mxu0 0
    %162 = vmatprep.subr.bf16.mxu0 0
    %163 = vmatpush2.bf16.msra.mxu0 0
    %164 = vmatprep.subr.bf16.mxu0 0
    %165 = vmatpush2.bf16.msra.mxu0 0
    %166 = vmatprep.subr.bf16.mxu0 0
    %167 = vmatpush2.bf16.msra.mxu0 0
    %168 = vmatprep.subr.bf16.mxu0 0
    %169 = vmatpush2.bf16.msra.mxu0 0
    %170 = vmatprep.subr.bf16.mxu0 0
    %171 = vmatpush2.bf16.msra.mxu0 0
    %172 = vmatprep.mubr.bf16.mxu0 0
    %173 = vmatmul.mubr.bf16.gmra.mxu0 %v117
    %v174 = vpop.f32.mrf.mxu0
    %v175 = vadd.f32 %v61, %v174
    %v176 = vpop.f32.mrf.mxu0
    %v177 = vpop.f32.mrf.mxu0
    %v178 = vadd.f32 %v61, %v177
    %v179 = vpop.f32.mrf.mxu0
    %180 = vmatprep.mubr.bf16.mxu0 0
    %181 = vmatmul.mubr.bf16.gmra.mxu0 %v120
    %v182 = vpop.f32.mrf.mxu0
    %v183 = vadd.f32 %v61, %v182
    %v184 = vpop.f32.mrf.mxu0
    %v185 = vpop.f32.mrf.mxu0
    %v186 = vadd.f32 %v61, %v185
    %v187 = vpop.f32.mrf.mxu0
    %188 = vmatprep.mubr.bf16.mxu0 0
    %189 = vmatmul.mubr.bf16.gmra.mxu0 %v123
    %v190 = vpop.f32.mrf.mxu0
    %v191 = vadd.f32 %v61, %v190
    %v192 = vpop.f32.mrf.mxu0
    %v193 = vpop.f32.mrf.mxu0
    %v194 = vadd.f32 %v61, %v193
    %v195 = vpop.f32.mrf.mxu0
    %196 = vmatprep.mubr.bf16.mxu0 0
    %197 = vmatmul.mubr.bf16.gmra.mxu0 %v126
    %v198 = vpop.f32.mrf.mxu0
    %v199 = vadd.f32 %v61, %v198
    %v200 = vpop.f32.mrf.mxu0
    %v201 = vpop.f32.mrf.mxu0
    %v202 = vadd.f32 %v61, %v201
    %v203 = vpop.f32.mrf.mxu0
    %204 = vmatprep.mubr.bf16.mxu0 0
    %205 = vmatmul.mubr.bf16.gmra.mxu0 %v129
    %v206 = vpop.f32.mrf.mxu0
    %v207 = vadd.f32 %v61, %v206
    %v208 = vpop.f32.mrf.mxu0
    %v209 = vpop.f32.mrf.mxu0
    %v210 = vadd.f32 %v61, %v209
    %v211 = vpop.f32.mrf.mxu0
    %212 = vmatprep.mubr.bf16.mxu0 0
    %213 = vmatmul.mubr.bf16.gmra.mxu0 %v132
    %v214 = vpop.f32.mrf.mxu0
    %v215 = vadd.f32 %v61, %v214
    %v216 = vpop.f32.mrf.mxu0
    %v217 = vpop.f32.mrf.mxu0
    %v218 = vadd.f32 %v61, %v217
    %v219 = vpop.f32.mrf.mxu0
    %220 = vmatprep.mubr.bf16.mxu0 0
    %221 = vmatmul.mubr.bf16.gmra.mxu0 %v135
    %v222 = vpop.f32.mrf.mxu0
    %v223 = vadd.f32 %v61, %v222
    %v224 = vpop.f32.mrf.mxu0
    %v225 = vpop.f32.mrf.mxu0
    %v226 = vadd.f32 %v61, %v225
    %v227 = vpop.f32.mrf.mxu0
    %228 = vmatprep.mubr.bf16.mxu0 0
    %229 = vmatmul.mubr.bf16.gmra.mxu0 %v138
    %v230 = vpop.f32.mrf.mxu0
    %v231 = vadd.f32 %v61, %v230
    %v232 = vpop.f32.mrf.mxu0
    %v233 = vpop.f32.mrf.mxu0
    %v234 = vadd.f32 %v61, %v233
    %v235 = vpop.f32.mrf.mxu0
    %236 = vdwg.mxu0
    %v237 = vmax.f32 %v175, 0.0
    %v238 = vmax.f32 %v178, 0.0
    %v239 = vmax.f32 %v183, 0.0
    %v240 = vmax.f32 %v186, 0.0
    %v241 = vmax.f32 %v191, 0.0
    %v242 = vmax.f32 %v194, 0.0
    %v243 = vmax.f32 %v199, 0.0
    %v244 = vmax.f32 %v202, 0.0
    %v245 = vmax.f32 %v207, 0.0
    %v246 = vmax.f32 %v210, 0.0
    %v247 = vmax.f32 %v215, 0.0
    %v248 = vmax.f32 %v218, 0.0
    %v249 = vmax.f32 %v223, 0.0
    %v250 = vmax.f32 %v226, 0.0
    %v251 = vmax.f32 %v231, 0.0
    %v252 = vmax.f32 %v234, 0.0
    %v253 = vld [vmem:[#allocation2] sm:$0xff]
    %v254 = vld [vmem:[#allocation2 + $0x8] sm:$0xff]
    %v255 = vld [vmem:[#allocation2 + $0x10] sm:$0xff]
    %v256 = vld [vmem:[#allocation2 + $0x18] sm:$0xff]
    %v257 = vld [vmem:[#allocation2 + $0x20] sm:$0xff]
    %v258 = vld [vmem:[#allocation2 + $0x28] sm:$0xff]
    %v259 = vld [vmem:[#allocation2 + $0x30] sm:$0xff]
    %v260 = vld [vmem:[#allocation2 + $0x38] sm:$0xff]
    %v261 = vld [vmem:[#allocation2 + $0x40] sm:$0xff]
    %v262 = vld [vmem:[#allocation2 + $0x48] sm:$0xff]
    %v263 = vld [vmem:[#allocation2 + $0x50] sm:$0xff]
    %v264 = vld [vmem:[#allocation2 + $0x58] sm:$0xff]
    %v265 = vld [vmem:[#allocation2 + $0x60] sm:$0xff]
    %v266 = vld [vmem:[#allocation2 + $0x68] sm:$0xff]
    %v267 = vld [vmem:[#allocation2 + $0x70] sm:$0xff]
    %v268 = vld [vmem:[#allocation2 + $0x78] sm:$0xff]
    %v269 = vld [vmem:[%s4] sm:$0x1]
    %v271 = vlaneseq
    %v272 = vshrl.u32 %v271, 7
    %v273 = vsub.s32 0, %v272
    %v274 = vrot.slane %v269, %v273
    %276 = vmatprep.subr.mxu0 0.0
    %277 = vmatpush1.msra.mxu0 %v268
    %278 = vmatprep.subr.mxu0 0.0
    %279 = vmatpush1.msra.mxu0 %v267
    %280 = vmatprep.subr.mxu0 0.0
    %281 = vmatpush1.msra.mxu0 %v266
    %282 = vmatprep.subr.mxu0 0.0
    %283 = vmatpush1.msra.mxu0 %v265
    %284 = vmatprep.subr.mxu0 0.0
    %285 = vmatpush1.msra.mxu0 %v264
    %286 = vmatprep.subr.mxu0 0.0
    %287 = vmatpush1.msra.mxu0 %v263
    %288 = vmatprep.subr.mxu0 0.0
    %289 = vmatpush1.msra.mxu0 %v262
    %290 = vmatprep.subr.mxu0 0.0
    %291 = vmatpush1.msra.mxu0 %v261
    %292 = vmatprep.subr.mxu0 0.0
    %293 = vmatpush1.msra.mxu0 %v260
    %294 = vmatprep.subr.mxu0 0.0
    %295 = vmatpush1.msra.mxu0 %v259
    %296 = vmatprep.subr.mxu0 0.0
    %297 = vmatpush1.msra.mxu0 %v258
    %298 = vmatprep.subr.mxu0 0.0
    %299 = vmatpush1.msra.mxu0 %v257
    %300 = vmatprep.subr.mxu0 0.0
    %301 = vmatpush1.msra.mxu0 %v256
    %302 = vmatprep.subr.mxu0 0.0
    %303 = vmatpush1.msra.mxu0 %v255
    %304 = vmatprep.subr.mxu0 0.0
    %305 = vmatpush1.msra.mxu0 %v254
    %306 = vmatprep.subr.mxu0 0.0
    %307 = vmatpush1.msra.mxu0 %v253
    %308 = vmatprep.subr.mxu0 0.0
    %309 = vmatpush2.msra.mxu0 0.0
    %310 = vmatprep.subr.mxu0 0.0
    %311 = vmatpush2.msra.mxu0 0.0
    %312 = vmatprep.subr.mxu0 0.0
    %313 = vmatpush2.msra.mxu0 0.0
    %314 = vmatprep.subr.mxu0 0.0
    %315 = vmatpush2.msra.mxu0 0.0
    %316 = vmatprep.subr.mxu0 0.0
    %317 = vmatpush2.msra.mxu0 0.0
    %318 = vmatprep.subr.mxu0 0.0
    %319 = vmatpush2.msra.mxu0 0.0
    %320 = vmatprep.subr.mxu0 0.0
    %321 = vmatpush2.msra.mxu0 0.0
    %322 = vmatprep.subr.mxu0 0.0
    %323 = vmatpush2.msra.mxu0 0.0
    %324 = vmatprep.subr.mxu0 0.0
    %325 = vmatpush2.msra.mxu0 0.0
    %326 = vmatprep.subr.mxu0 0.0
    %327 = vmatpush2.msra.mxu0 0.0
    %328 = vmatprep.subr.mxu0 0.0
    %329 = vmatpush2.msra.mxu0 0.0
    %330 = vmatprep.subr.mxu0 0.0
    %331 = vmatpush2.msra.mxu0 0.0
    %332 = vmatprep.subr.mxu0 0.0
    %333 = vmatpush2.msra.mxu0 0.0
    %334 = vmatprep.subr.mxu0 0.0
    %335 = vmatpush2.msra.mxu0 0.0
    %336 = vmatprep.subr.mxu0 0.0
    %337 = vmatpush2.msra.mxu0 0.0
    %338 = vmatprep.subr.mxu0 0.0
    %339 = vmatpush2.msra.mxu0 0.0
    %340 = vmatprep.mubr.f32.mxu0 0.0
    %341 = vmatmul.mubr.f32.gmra.mxu0 %v237
    %v342 = vpop.f32.mrf.mxu0
    %v343 = vadd.f32 %v274, %v342
    %v344 = vpop.f32.mrf.mxu0
    %345 = vmatprep.mubr.f32.mxu0 0.0
    %346 = vmatmul.mubr.f32.gmra.mxu0 %v238
    %v347 = vpop.f32.mrf.mxu0
    %v348 = vadd.f32 %v274, %v347
    %v349 = vpop.f32.mrf.mxu0
    %350 = vmatprep.mubr.f32.mxu0 0.0
    %351 = vmatmul.mubr.f32.gmra.mxu0 %v239
    %v352 = vpop.f32.mrf.mxu0
    %v353 = vadd.f32 %v274, %v352
    %v354 = vpop.f32.mrf.mxu0
    %355 = vmatprep.mubr.f32.mxu0 0.0
    %356 = vmatmul.mubr.f32.gmra.mxu0 %v240
    %v357 = vpop.f32.mrf.mxu0
    %v358 = vadd.f32 %v274, %v357
    %v359 = vpop.f32.mrf.mxu0
    %360 = vmatprep.mubr.f32.mxu0 0.0
    %361 = vmatmul.mubr.f32.gmra.mxu0 %v241
    %v362 = vpop.f32.mrf.mxu0
    %v363 = vadd.f32 %v274, %v362
    %v364 = vpop.f32.mrf.mxu0
    %365 = vmatprep.mubr.f32.mxu0 0.0
    %366 = vmatmul.mubr.f32.gmra.mxu0 %v242
    %v367 = vpop.f32.mrf.mxu0
    %v368 = vadd.f32 %v274, %v367
    %v369 = vpop.f32.mrf.mxu0
    %370 = vmatprep.mubr.f32.mxu0 0.0
    %371 = vmatmul.mubr.f32.gmra.mxu0 %v243
    %v372 = vpop.f32.mrf.mxu0
    %v373 = vadd.f32 %v274, %v372
    %v374 = vpop.f32.mrf.mxu0
    %375 = vmatprep.mubr.f32.mxu0 0.0
    %376 = vmatmul.mubr.f32.gmra.mxu0 %v244
    %v377 = vpop.f32.mrf.mxu0
    %v378 = vadd.f32 %v274, %v377
    %v379 = vpop.f32.mrf.mxu0
    %380 = vmatprep.mubr.f32.mxu0 0.0
    %381 = vmatmul.mubr.f32.gmra.mxu0 %v245
    %v382 = vpop.f32.mrf.mxu0
    %v383 = vadd.f32 %v274, %v382
    %v384 = vpop.f32.mrf.mxu0
    %385 = vmatprep.mubr.f32.mxu0 0.0
    %386 = vmatmul.mubr.f32.gmra.mxu0 %v246
    %v387 = vpop.f32.mrf.mxu0
    %v388 = vadd.f32 %v274, %v387
    %v389 = vpop.f32.mrf.mxu0
    %390 = vmatprep.mubr.f32.mxu0 0.0
    %391 = vmatmul.mubr.f32.gmra.mxu0 %v247
    %v392 = vpop.f32.mrf.mxu0
    %v393 = vadd.f32 %v274, %v392
    %v394 = vpop.f32.mrf.mxu0
    %395 = vmatprep.mubr.f32.mxu0 0.0
    %396 = vmatmul.mubr.f32.gmra.mxu0 %v248
    %v397 = vpop.f32.mrf.mxu0
    %v398 = vadd.f32 %v274, %v397
    %v399 = vpop.f32.mrf.mxu0
    %400 = vmatprep.mubr.f32.mxu0 0.0
    %401 = vmatmul.mubr.f32.gmra.mxu0 %v249
    %v402 = vpop.f32.mrf.mxu0
    %v403 = vadd.f32 %v274, %v402
    %v404 = vpop.f32.mrf.mxu0
    %405 = vmatprep.mubr.f32.mxu0 0.0
    %406 = vmatmul.mubr.f32.gmra.mxu0 %v250
    %v407 = vpop.f32.mrf.mxu0
    %v408 = vadd.f32 %v274, %v407
    %v409 = vpop.f32.mrf.mxu0
    %410 = vmatprep.mubr.f32.mxu0 0.0
    %411 = vmatmul.mubr.f32.gmra.mxu0 %v251
    %v412 = vpop.f32.mrf.mxu0
    %v413 = vadd.f32 %v274, %v412
    %v414 = vpop.f32.mrf.mxu0
    %415 = vmatprep.mubr.f32.mxu0 0.0
    %416 = vmatmul.mubr.f32.gmra.mxu0 %v252
    %v417 = vpop.f32.mrf.mxu0
    %v418 = vadd.f32 %v274, %v417
    %v419 = vpop.f32.mrf.mxu0
    %420 = vdwg.mxu0
    %421 = vmax.xlane.f32.xlu0 %v343
    %v422 = vpop.xlane.xlu0 %421
    %423 = vmax.xlane.f32.xlu0 %v348
    %v424 = vpop.xlane.xlu0 %423
    %425 = vmax.xlane.f32.xlu0 %v353
    %v426 = vpop.xlane.xlu0 %425
    %427 = vmax.xlane.f32.xlu0 %v358
    %v428 = vpop.xlane.xlu0 %427
    %429 = vmax.xlane.f32.xlu0 %v363
    %v430 = vpop.xlane.xlu0 %429
    %431 = vmax.xlane.f32.xlu0 %v368
    %v432 = vpop.xlane.xlu0 %431
    %433 = vmax.xlane.f32.xlu0 %v373
    %v434 = vpop.xlane.xlu0 %433
    %435 = vmax.xlane.f32.xlu0 %v378
    %v436 = vpop.xlane.xlu0 %435
    %437 = vmax.xlane.f32.xlu0 %v383
    %v438 = vpop.xlane.xlu0 %437
    %439 = vmax.xlane.f32.xlu0 %v388
    %v440 = vpop.xlane.xlu0 %439
    %441 = vmax.xlane.f32.xlu0 %v393
    %v442 = vpop.xlane.xlu0 %441
    %443 = vmax.xlane.f32.xlu0 %v398
    %v444 = vpop.xlane.xlu0 %443
    %445 = vmax.xlane.f32.xlu0 %v403
    %v446 = vpop.xlane.xlu0 %445
    %447 = vmax.xlane.f32.xlu0 %v408
    %v448 = vpop.xlane.xlu0 %447
    %449 = vmax.xlane.f32.xlu0 %v413
    %v450 = vpop.xlane.xlu0 %449
    %451 = vmax.xlane.f32.xlu0 %v418
    %v452 = vpop.xlane.xlu0 %451
    %v453 = vsub.f32 %v343, %v422
    %v454 = vsub.f32 %v348, %v424
    %v455 = vsub.f32 %v353, %v426
    %v456 = vsub.f32 %v358, %v428
    %v457 = vsub.f32 %v363, %v430
    %v458 = vsub.f32 %v368, %v432
    %v459 = vsub.f32 %v373, %v434
    %v460 = vsub.f32 %v378, %v436
    %v461 = vsub.f32 %v383, %v438
    %v462 = vsub.f32 %v388, %v440
    %v463 = vsub.f32 %v393, %v442
    %v464 = vsub.f32 %v398, %v444
    %v465 = vsub.f32 %v403, %v446
    %v466 = vsub.f32 %v408, %v448
    %v467 = vsub.f32 %v413, %v450
    %v468 = vsub.f32 %v418, %v452
    %v469 = vmul.f32 %v453, 1.442695
    %v470 = vpow.pop %v469
    %v471 = vmul.f32 %v454, 1.442695
    %v472 = vpow.pop %v471
    %v473 = vmul.f32 %v455, 1.442695
    %v474 = vpow.pop %v473
    %v475 = vmul.f32 %v456, 1.442695
    %v476 = vpow.pop %v475
    %v477 = vmul.f32 %v457, 1.442695
    %v478 = vpow.pop %v477
    %v479 = vmul.f32 %v458, 1.442695
    %v480 = vpow.pop %v479
    %v481 = vmul.f32 %v459, 1.442695
    %v482 = vpow.pop %v481
    %v483 = vmul.f32 %v460, 1.442695
    %v484 = vpow.pop %v483
    %v485 = vmul.f32 %v461, 1.442695
    %v486 = vpow.pop %v485
    %v487 = vmul.f32 %v462, 1.442695
    %v488 = vpow.pop %v487
    %v489 = vmul.f32 %v463, 1.442695
    %v490 = vpow.pop %v489
    %v491 = vmul.f32 %v464, 1.442695
    %v492 = vpow.pop %v491
    %v493 = vmul.f32 %v465, 1.442695
    %v494 = vpow.pop %v493
    %v495 = vmul.f32 %v466, 1.442695
    %v496 = vpow.pop %v495
    %v497 = vmul.f32 %v467, 1.442695
    %v498 = vpow.pop %v497
    %v499 = vmul.f32 %v468, 1.442695
    %v500 = vpow.pop %v499
    %501 = vadd.xlane.f32.xlu0 %v470
    %v502 = vpop.xlane.xlu0 %501
    %503 = vadd.xlane.f32.xlu0 %v472
    %v504 = vpop.xlane.xlu0 %503
    %505 = vadd.xlane.f32.xlu0 %v474
    %v506 = vpop.xlane.xlu0 %505
    %507 = vadd.xlane.f32.xlu0 %v476
    %v508 = vpop.xlane.xlu0 %507
    %509 = vadd.xlane.f32.xlu0 %v478
    %v510 = vpop.xlane.xlu0 %509
    %511 = vadd.xlane.f32.xlu0 %v480
    %v512 = vpop.xlane.xlu0 %511
    %513 = vadd.xlane.f32.xlu0 %v482
    %v514 = vpop.xlane.xlu0 %513
    %515 = vadd.xlane.f32.xlu0 %v484
    %v516 = vpop.xlane.xlu0 %515
    %517 = vadd.xlane.f32.xlu0 %v486
    %v518 = vpop.xlane.xlu0 %517
    %519 = vadd.xlane.f32.xlu0 %v488
    %v520 = vpop.xlane.xlu0 %519
    %521 = vadd.xlane.f32.xlu0 %v490
    %v522 = vpop.xlane.xlu0 %521
    %523 = vadd.xlane.f32.xlu0 %v492
    %v524 = vpop.xlane.xlu0 %523
    %525 = vadd.xlane.f32.xlu0 %v494
    %v526 = vpop.xlane.xlu0 %525
    %527 = vadd.xlane.f32.xlu0 %v496
    %v528 = vpop.xlane.xlu0 %527
    %529 = vadd.xlane.f32.xlu0 %v498
    %v530 = vpop.xlane.xlu0 %529
    %531 = vadd.xlane.f32.xlu0 %v500
    %v532 = vpop.xlane.xlu0 %531
    %v533 = vlog2.pop %v502
    %v534 = vmul.f32 %v533, 0.6931472
    %v535 = vlog2.pop %v504
    %v536 = vmul.f32 %v535, 0.6931472
    %v537 = vlog2.pop %v506
    %v538 = vmul.f32 %v537, 0.6931472
    %v539 = vlog2.pop %v508
    %v540 = vmul.f32 %v539, 0.6931472
    %v541 = vlog2.pop %v510
    %v542 = vmul.f32 %v541, 0.6931472
    %v543 = vlog2.pop %v512
    %v544 = vmul.f32 %v543, 0.6931472
    %v545 = vlog2.pop %v514
    %v546 = vmul.f32 %v545, 0.6931472
    %v547 = vlog2.pop %v516
    %v548 = vmul.f32 %v547, 0.6931472
    %v549 = vlog2.pop %v518
    %v550 = vmul.f32 %v549, 0.6931472
    %v551 = vlog2.pop %v520
    %v552 = vmul.f32 %v551, 0.6931472
    %v553 = vlog2.pop %v522
    %v554 = vmul.f32 %v553, 0.6931472
    %v555 = vlog2.pop %v524
    %v556 = vmul.f32 %v555, 0.6931472
    %v557 = vlog2.pop %v526
    %v558 = vmul.f32 %v557, 0.6931472
    %v559 = vlog2.pop %v528
    %v560 = vmul.f32 %v559, 0.6931472
    %v561 = vlog2.pop %v530
    %v562 = vmul.f32 %v561, 0.6931472
    %v563 = vlog2.pop %v532
    %v564 = vmul.f32 %v563, 0.6931472
    %v565 = vsub.f32 %v453, %v534
    %v566 = vsub.f32 %v454, %v536
    %v567 = vsub.f32 %v455, %v538
    %v568 = vsub.f32 %v456, %v540
    %v569 = vsub.f32 %v457, %v542
    %v570 = vsub.f32 %v458, %v544
    %v571 = vsub.f32 %v459, %v546
    %v572 = vsub.f32 %v460, %v548
    %v573 = vsub.f32 %v461, %v550
    %v574 = vsub.f32 %v462, %v552
    %v575 = vsub.f32 %v463, %v554
    %v576 = vsub.f32 %v464, %v556
    %v577 = vsub.f32 %v465, %v558
    %v578 = vsub.f32 %v466, %v560
    %v579 = vsub.f32 %v467, %v562
    %v580 = vsub.f32 %v468, %v564
    %581 = vxpose.xlu0.b32.start [1/16] %v565, 128
    %582 = vxpose.xlu0.b32.cont [2/16] %v566, 128
    %583 = vxpose.xlu0.b32.cont [3/16] %v567, 128
    %584 = vxpose.xlu0.b32.cont [4/16] %v568, 128
    %585 = vxpose.xlu0.b32.cont [5/16] %v569, 128
    %586 = vxpose.xlu0.b32.cont [6/16] %v570, 128
    %587 = vxpose.xlu0.b32.cont [7/16] %v571, 128
    %588 = vxpose.xlu0.b32.cont [8/16] %v572, 128
    %589 = vxpose.xlu0.b32.cont [9/16] %v573, 128
    %590 = vxpose.xlu0.b32.cont [10/16] %v574, 128
    %591 = vxpose.xlu0.b32.cont [11/16] %v575, 128
    %592 = vxpose.xlu0.b32.cont [12/16] %v576, 128
    %593 = vxpose.xlu0.b32.cont [13/16] %v577, 128
    %594 = vxpose.xlu0.b32.cont [14/16] %v578, 128
    %595 = vxpose.xlu0.b32.cont [15/16] %v579, 128
    %596 = vxpose.xlu0.b32.end [16/16] %v580, 128
    %v597 = vpop.trf.xlu0
    %v598 = vpop.trf.xlu0
    %v599 = vpop.trf.xlu0
    %v600 = vpop.trf.xlu0
    %v601 = vpop.trf.xlu0
    %v602 = vpop.trf.xlu0
    %v603 = vpop.trf.xlu0
    %v604 = vpop.trf.xlu0
    %v605 = vpop.trf.xlu0
    %v606 = vpop.trf.xlu0
    %v607 = vpop.trf.xlu0
    %v608 = vpop.trf.xlu0
    %v609 = vpop.trf.xlu0
    %v610 = vpop.trf.xlu0
    %v611 = vpop.trf.xlu0
    %v612 = vpop.trf.xlu0
    %613 = vst [vmem:[#allocation5] sm:$0xff] %v597
    %614 = vst [vmem:[#allocation5 + $0x8] sm:$0xff] %v598
    // Predicated region
    $region26: #{tpu_custom_call.1} parent=1 // pred_check
      _
    $region27: #{tpu_custom_call.1} parent=1 // pred_check_branch
      %616 = sbr.rel (0) target = $region29
    $region28: #{tpu_custom_call.1} parent=1 // pred_region
      %s618 = ssub.s32 256, 256
      %619 = vsyncadd [#allocation4], %s618
      %s620 = sshll.u32 [#allocation5], 4
      %s621 = int_to_ptr.vmem [resolvable:$true] %s620
      %626 = dma.vmem_to_hbm [thread:$0]  %s621, 256, %s5, [#allocation4], 128, 128, 8
    $region29: #{tpu_custom_call.1} parent=1 // pred_fallthru
      _
    // Predicated region
    $region30: #{tpu_custom_call.1} parent=1 // pred_check
      _
    $region31: #{tpu_custom_call.1} parent=1 // pred_check_branch
      %628 = sbr.rel (0) target = $region33
    $region32: #{tpu_custom_call.1} parent=1 // pred_region
      %629 = dma.done [#allocation4], 256
    $region33: #{tpu_custom_call.1} parent=1 // pred_fallthru
      _
    %630 = vsyncpa [#allocation3], 1
    %631 = vsyncpa [#allocation4], 1

</llo_original>
